<compile_context>
chip_gen: v5e
topology: v5e:2x2
jax: 0.10.0
libtpu: 0.0.40
codegen_flags: <defaults>
</compile_context>

<pallas_src>
import functools

import jax
import jax.numpy as jnp
import numpy as np
from jax.experimental import pallas as pl
from jax.experimental.pallas import tpu as pltpu


# ----------------------------------------------------------------------------
# Host-side helpers: Gaussian window and banded "same"-padding blur matrices.
# ----------------------------------------------------------------------------
def _gaussian_1d(window_size: int, sigma: float) -> np.ndarray:
    center = window_size // 2
    g = np.exp(-((np.arange(window_size) - center) ** 2) / (2.0 * sigma ** 2))
    return (g / g.sum()).astype(np.float32)


def _band_blur_matrix(n: int, g: np.ndarray) -> np.ndarray:
    """Symmetric banded matrix M with M[i, j] = g[j - i + P] for |j - i| <= P.

    With zero 'same' padding, a 1D Gaussian correlation along rows is
    out = M @ x and along columns is out = x @ M (g is symmetric)."""
    ws = g.shape[0]
    P = ws // 2
    idx = np.arange(n)
    d = idx[None, :] - idx[:, None] + P
    valid = (d >= 0) & (d < ws)
    return np.where(valid, g[np.clip(d, 0, ws - 1)], 0.0).astype(np.float32)


# ----------------------------------------------------------------------------
# Pallas kernel: SSIM-map partial sums for a block of `nb` images.
# ----------------------------------------------------------------------------
def _ssim_block_kernel(img1_ref, img2_ref, mh_ref, mw_ref, out_ref, *,
                       c1, c2, fold_rows):
    nb, H, W = img1_ref.shape
    x1 = img1_ref[...]          # (nb, H, W)
    x2 = img2_ref[...]          # (nb, H, W)
    mh = mh_ref[...]            # (H, H) symmetric banded Gaussian (rows)
    mw = mw_ref[...]            # (W, W) symmetric banded Gaussian (cols)

    # Stack the five maps that need blurring along the leading (map) axis so
    # the blurs are applied to everything at once.
    z = jnp.concatenate([x1, x2, x1 * x1, x2 * x2, x1 * x2], axis=0)  # (5nb,H,W)
    nmaps = 5 * nb

    # --- W-direction blur: contract the lane axis with the banded matrix.
    if fold_rows:
        # H % 8 == 0: merging (5nb, H) into the sublane axis is layout
        # preserving, so this is one big MXU matmul (M = 5*nb*H rows).
        t = jnp.dot(z.reshape(nmaps * H, W), mw,
                    preferred_element_type=jnp.float32).reshape(nmaps, H, W)
    else:
        # Fallback for unaligned H: batched matmul (flash-attention pattern).
        mw_b = jnp.broadcast_to(mw, (nmaps, W, W))
        t = jnp.einsum('nhk,nkw->nhw', z, mw_b,
                       preferred_element_type=jnp.float32)

    # --- H-direction blur: batched left-multiply by the banded matrix.
    mh_b = jnp.broadcast_to(mh, (nmaps, H, H))
    blurred = jnp.einsum('nhk,nkw->nhw', mh_b, t,
                         preferred_element_type=jnp.float32)

    mu1 = blurred[0 * nb:1 * nb]
    mu2 = blurred[1 * nb:2 * nb]
    e11 = blurred[2 * nb:3 * nb]
    e22 = blurred[3 * nb:4 * nb]
    e12 = blurred[4 * nb:5 * nb]

    mu1_sq = mu1 * mu1
    mu2_sq = mu2 * mu2
    mu1_mu2 = mu1 * mu2
    sigma1_sq = e11 - mu1_sq
    sigma2_sq = e22 - mu2_sq
    sigma12 = e12 - mu1_mu2

    num = (2.0 * mu1_mu2 + c1) * (2.0 * sigma12 + c2)
    den = (mu1_sq + mu2_sq + c1) * (sigma1_sq + sigma2_sq + c2)
    ssim_map = num / den                                   # (nb, H, W)

    # Per-image partial sums straight into SMEM (scalar path; no padded VMEM
    # tile and no masked lane-sparse vector stores).  nb is small and static.
    base = pl.program_id(0) * nb
    for i in range(nb):
        out_ref[base + i, 0] = jnp.sum(ssim_map[i])


# ----------------------------------------------------------------------------
# Wrapper matching SSIMLoss.forward(img1, img2).
# ----------------------------------------------------------------------------
def ssim_loss_pallas(img1, img2, *, window_size=11, sigma=1.5, size_average=True):
    B, C, H, W = img1.shape
    n_img = B * C

    g = _gaussian_1d(window_size, sigma)
    mh = jnp.asarray(_band_blur_matrix(H, g))
    mw = jnp.asarray(_band_blur_matrix(W, g))

    x1 = img1.reshape(n_img, H, W).astype(jnp.float32)
    x2 = img2.reshape(n_img, H, W).astype(jnp.float32)

    # Images per grid step: largest divisor of n_img that keeps the working
    # set comfortably in VMEM and the static per-image epilogue loop small.
    per_img_bytes = (24 * H * W + 5 * H * H + 5 * W * W) * 4
    vmem_budget = 8 * 1024 * 1024
    cap = max(1, min(16, vmem_budget // max(per_img_bytes, 1)))
    nb = min(n_img, cap)
    while n_img % nb:
        nb -= 1

    kernel = functools.partial(_ssim_block_kernel, c1=0.01 ** 2, c2=0.03 ** 2,
                               fold_rows=(H % 8 == 0))

    partial = pl.pallas_call(
        kernel,
        out_shape=jax.ShapeDtypeStruct((n_img, 1), jnp.float32),
        grid=(n_img // nb,),
        in_specs=[
            pl.BlockSpec((nb, H, W), lambda b: (b, 0, 0)),   # img1 block
            pl.BlockSpec((nb, H, W), lambda b: (b, 0, 0)),   # img2 block
            pl.BlockSpec((H, H), lambda b: (0, 0)),          # row blur matrix
            pl.BlockSpec((W, W), lambda b: (0, 0)),          # col blur matrix
        ],
        # Whole (n_img, 1) array lives in SMEM; each grid step writes its rows.
        out_specs=pl.BlockSpec(memory_space=pltpu.MemorySpace.SMEM),
        compiler_params=pltpu.CompilerParams(
            dimension_semantics=("arbitrary",)),
    )(x1, x2, mh, mw)

    if size_average:
        return 1.0 - jnp.sum(partial) / float(n_img * H * W)
    # size_average=False: per-batch-element mean over (C, H, W)
    return 1.0 - partial.reshape(B, C).sum(axis=1) / float(C * H * W)


# ----------------------------------------------------------------------------
# Pure-JAX reference (direct depthwise conv2d) mirroring the PyTorch forward.
# ----------------------------------------------------------------------------
def ssim_loss_reference(img1, img2, *, window_size=11, sigma=1.5):
    B, C, H, W = img1.shape
    g = _gaussian_1d(window_size, sigma)
    w2d = jnp.asarray(np.outer(g, g), dtype=jnp.float32)
    kernel = jnp.tile(w2d[None, None], (C, 1, 1, 1))        # (C, 1, ws, ws)
    pad = window_size // 2

    def conv(x):
        return jax.lax.conv_general_dilated(
            x.astype(jnp.float32), kernel, window_strides=(1, 1),
            padding=[(pad, pad), (pad, pad)],
            dimension_numbers=('NCHW', 'OIHW', 'NCHW'),
            feature_group_count=C,
            precision=jax.lax.Precision.HIGHEST)

    mu1 = conv(img1)
    mu2 = conv(img2)
    mu1_sq = mu1 * mu1
    mu2_sq = mu2 * mu2
    mu1_mu2 = mu1 * mu2
    sigma1_sq = conv(img1 * img1) - mu1_sq
    sigma2_sq = conv(img2 * img2) - mu2_sq
    sigma12 = conv(img1 * img2) - mu1_mu2
    C1 = 0.01 ** 2
    C2 = 0.03 ** 2
    ssim_map = (2 * mu1_mu2 + C1) * (2 * sigma12 + C2) / (
        (mu1_sq + mu2_sq + C1) * (sigma1_sq + sigma2_sq + C2))
    return 1.0 - jnp.mean(ssim_map)


if __name__ == "__main__":
    # Module's create_window uses channel=1, so forward requires 1-channel images.
    B, C, H, W = 2, 1, 16, 16

    key = jax.random.PRNGKey(0)
    k1, k2 = jax.random.split(key)
    img1 = jax.random.uniform(k1, (B, C, H, W), dtype=jnp.float32)
    img2 = jnp.clip(img1 + 0.1 * jax.random.normal(k2, (B, C, H, W),
                                                   dtype=jnp.float32), 0.0, 1.0)

    loss = ssim_loss_pallas(img1, img2)
    loss = jax.block_until_ready(loss)

    ref = ssim_loss_reference(img1, img2)
    assert loss.shape == (), f"expected scalar loss, got {loss.shape}"
    assert jnp.allclose(loss, ref, atol=1e-4, rtol=1e-4), \
        f"mismatch vs reference: {loss} vs {ref}"

    print("KERNEL_OK")
</pallas_src>

<mosaic_0001>
module attributes {stable_mosaic.version = 11 : i64} {
  func.func @_ssim_block_kernel(%arg0: i32, %arg1: memref<2x16x16xf32, #tpu.memory_space<vmem>>, %arg2: memref<2x16x16xf32, #tpu.memory_space<vmem>>, %arg3: memref<16x16xf32, #tpu.memory_space<vmem>>, %arg4: memref<16x16xf32, #tpu.memory_space<vmem>>, %arg5: memref<2x1xf32, #tpu.memory_space<smem>>) attributes {dimension_semantics = [#tpu.dimension_semantics<arbitrary>], iteration_bounds = array<i64: 1>, scalar_prefetch = 0 : i64, scratch_operands = 0 : i64, tpu.core_type = #tpu.core_type<tc>, window_params = [{transform_indices = @transform_0, window_bounds = array<i64: 2, 16, 16>}, {transform_indices = @transform_1, window_bounds = array<i64: 2, 16, 16>}, {pipeline_mode = #tpu.pipeline_mode<synchronous>, transform_indices = @transform_2, window_bounds = array<i64: 16, 16>}, {pipeline_mode = #tpu.pipeline_mode<synchronous>, transform_indices = @transform_3, window_bounds = array<i64: 16, 16>}, {transform_indices = @transform_4, window_bounds = array<i64: 2, 1>}]} {
    %c0 = arith.constant 0 : index
    %c0_0 = arith.constant 0 : index
    %c0_1 = arith.constant 0 : index
    %0 = vector.load %arg1[%c0, %c0_0, %c0_1] : memref<2x16x16xf32, #tpu.memory_space<vmem>>, vector<2x16x16xf32>
    %c0_2 = arith.constant 0 : index
    %c0_3 = arith.constant 0 : index
    %c0_4 = arith.constant 0 : index
    %1 = vector.load %arg2[%c0_2, %c0_3, %c0_4] : memref<2x16x16xf32, #tpu.memory_space<vmem>>, vector<2x16x16xf32>
    %c0_5 = arith.constant 0 : index
    %c0_6 = arith.constant 0 : index
    %2 = vector.load %arg3[%c0_5, %c0_6] : memref<16x16xf32, #tpu.memory_space<vmem>>, vector<16x16xf32>
    %c0_7 = arith.constant 0 : index
    %c0_8 = arith.constant 0 : index
    %3 = vector.load %arg4[%c0_7, %c0_8] : memref<16x16xf32, #tpu.memory_space<vmem>>, vector<16x16xf32>
    %4 = arith.mulf %0, %0 : vector<2x16x16xf32>
    %5 = arith.mulf %1, %1 : vector<2x16x16xf32>
    %6 = arith.mulf %0, %1 : vector<2x16x16xf32>
    %7 = tpu.concatenate %0, %1, %4, %5, %6 in 0 : vector<2x16x16xf32>, vector<2x16x16xf32>, vector<2x16x16xf32>, vector<2x16x16xf32>, vector<2x16x16xf32> -> vector<10x16x16xf32>
    %8 = vector.shape_cast %7 : vector<10x16x16xf32> to vector<160x16xf32>
    %cst = arith.constant dense<0.000000e+00> : vector<160x16xf32>
    %9 = tpu.matmul %8, %3, %cst {dimension_numbers = #tpu.dot_dimension_numbers<[1], [0], [0], [1], [0, 0, 1, 1], [], []>} : vector<160x16xf32>, vector<16x16xf32>, vector<160x16xf32> -> vector<160x16xf32>
    %10 = vector.shape_cast %9 : vector<160x16xf32> to vector<10x16x16xf32>
    %11 = vector.shape_cast %2 : vector<16x16xf32> to vector<1x16x16xf32>
    %12 = vector.broadcast %11 : vector<1x16x16xf32> to vector<10x16x16xf32>
    "tpu.trace_start"() <{level = 10 : i32, message = "nhk,nkw->nhw"}> : () -> ()
    %cst_9 = arith.constant dense<0.000000e+00> : vector<10x16x16xf32>
    %13 = tpu.matmul %12, %10, %cst_9 {dimension_numbers = #tpu.dot_dimension_numbers<[2], [1], [1], [2], [0, 0, 0, 1, 1, 2], [0], [0]>} : vector<10x16x16xf32>, vector<10x16x16xf32>, vector<10x16x16xf32> -> vector<10x16x16xf32>
    "tpu.trace_stop"() : () -> ()
    %14 = vector.extract_strided_slice %13 {offsets = [0, 0, 0], sizes = [2, 16, 16], strides = [1, 1, 1]} : vector<10x16x16xf32> to vector<2x16x16xf32>
    %15 = vector.extract_strided_slice %13 {offsets = [2, 0, 0], sizes = [2, 16, 16], strides = [1, 1, 1]} : vector<10x16x16xf32> to vector<2x16x16xf32>
    %16 = vector.extract_strided_slice %13 {offsets = [4, 0, 0], sizes = [2, 16, 16], strides = [1, 1, 1]} : vector<10x16x16xf32> to vector<2x16x16xf32>
    %17 = vector.extract_strided_slice %13 {offsets = [6, 0, 0], sizes = [2, 16, 16], strides = [1, 1, 1]} : vector<10x16x16xf32> to vector<2x16x16xf32>
    %18 = vector.extract_strided_slice %13 {offsets = [8, 0, 0], sizes = [2, 16, 16], strides = [1, 1, 1]} : vector<10x16x16xf32> to vector<2x16x16xf32>
    %19 = arith.mulf %14, %14 : vector<2x16x16xf32>
    %20 = arith.mulf %15, %15 : vector<2x16x16xf32>
    %21 = arith.mulf %14, %15 : vector<2x16x16xf32>
    %22 = arith.subf %16, %19 : vector<2x16x16xf32>
    %23 = arith.subf %17, %20 : vector<2x16x16xf32>
    %24 = arith.subf %18, %21 : vector<2x16x16xf32>
    %cst_10 = arith.constant 2.000000e+00 : f32
    %25 = vector.broadcast %cst_10 : f32 to vector<2x16x16xf32>
    %26 = arith.mulf %25, %21 : vector<2x16x16xf32>
    %cst_11 = arith.constant 9.99999974E-5 : f32
    %27 = vector.broadcast %cst_11 : f32 to vector<2x16x16xf32>
    %28 = arith.addf %26, %27 : vector<2x16x16xf32>
    %cst_12 = arith.constant 2.000000e+00 : f32
    %29 = vector.broadcast %cst_12 : f32 to vector<2x16x16xf32>
    %30 = arith.mulf %29, %24 : vector<2x16x16xf32>
    %cst_13 = arith.constant 8.99999984E-4 : f32
    %31 = vector.broadcast %cst_13 : f32 to vector<2x16x16xf32>
    %32 = arith.addf %30, %31 : vector<2x16x16xf32>
    %33 = arith.mulf %28, %32 : vector<2x16x16xf32>
    %34 = arith.addf %19, %20 : vector<2x16x16xf32>
    %cst_14 = arith.constant 9.99999974E-5 : f32
    %35 = vector.broadcast %cst_14 : f32 to vector<2x16x16xf32>
    %36 = arith.addf %34, %35 : vector<2x16x16xf32>
    %37 = arith.addf %22, %23 : vector<2x16x16xf32>
    %cst_15 = arith.constant 8.99999984E-4 : f32
    %38 = vector.broadcast %cst_15 : f32 to vector<2x16x16xf32>
    %39 = arith.addf %37, %38 : vector<2x16x16xf32>
    %40 = arith.mulf %36, %39 : vector<2x16x16xf32>
    %41 = arith.divf %33, %40 : vector<2x16x16xf32>
    %c2_i32 = arith.constant 2 : i32
    %42 = arith.muli %arg0, %c2_i32 : i32
    %43 = vector.extract_strided_slice %41 {offsets = [0, 0, 0], sizes = [1, 16, 16], strides = [1, 1, 1]} : vector<2x16x16xf32> to vector<1x16x16xf32>
    %44 = vector.shape_cast %43 : vector<1x16x16xf32> to vector<16x16xf32>
    %45 = vector.shape_cast %44 : vector<16x16xf32> to vector<1x16x16xf32>
    %cst_16 = arith.constant dense<0.000000e+00> : vector<1xf32>
    %46 = vector.multi_reduction <add>, %45, %cst_16 [1, 2] : vector<1x16x16xf32> to vector<1xf32>
    %47 = vector.shape_cast %46 : vector<1xf32> to vector<1x1x1xf32>
    %48 = vector.extract %47[0, 0, 0] : f32 from vector<1x1x1xf32>
    %c0_i32 = arith.constant 0 : i32
    %49 = arith.addi %42, %c0_i32 : i32
    %50 = arith.index_cast %49 : i32 to index
    %c0_17 = arith.constant 0 : index
    %51 = memref.load %arg5[%50, %c0_17] : memref<2x1xf32, #tpu.memory_space<smem>>
    memref.store %48, %arg5[%50, %c0_17] : memref<2x1xf32, #tpu.memory_space<smem>>
    %52 = vector.extract_strided_slice %41 {offsets = [1, 0, 0], sizes = [1, 16, 16], strides = [1, 1, 1]} : vector<2x16x16xf32> to vector<1x16x16xf32>
    %53 = vector.shape_cast %52 : vector<1x16x16xf32> to vector<16x16xf32>
    %54 = vector.shape_cast %53 : vector<16x16xf32> to vector<1x16x16xf32>
    %cst_18 = arith.constant dense<0.000000e+00> : vector<1xf32>
    %55 = vector.multi_reduction <add>, %54, %cst_18 [1, 2] : vector<1x16x16xf32> to vector<1xf32>
    %56 = vector.shape_cast %55 : vector<1xf32> to vector<1x1x1xf32>
    %57 = vector.extract %56[0, 0, 0] : f32 from vector<1x1x1xf32>
    %c1_i32 = arith.constant 1 : i32
    %58 = arith.addi %42, %c1_i32 : i32
    %59 = arith.index_cast %58 : i32 to index
    %c0_19 = arith.constant 0 : index
    %60 = memref.load %arg5[%59, %c0_19] : memref<2x1xf32, #tpu.memory_space<smem>>
    memref.store %57, %arg5[%59, %c0_19] : memref<2x1xf32, #tpu.memory_space<smem>>
    return
  }
  func.func @transform_0(%arg0: i32) -> (i32, i32, i32) {
    %c0_i32 = arith.constant 0 : i32
    %c0_i32_0 = arith.constant 0 : i32
    %c0_i32_1 = arith.constant 0 : i32
    return %arg0, %c0_i32, %c0_i32_0 : i32, i32, i32
  }
  func.func @transform_1(%arg0: i32) -> (i32, i32, i32) {
    %c0_i32 = arith.constant 0 : i32
    %c0_i32_0 = arith.constant 0 : i32
    %c0_i32_1 = arith.constant 0 : i32
    return %arg0, %c0_i32, %c0_i32_0 : i32, i32, i32
  }
  func.func @transform_2(%arg0: i32) -> (i32, i32) {
    %c0_i32 = arith.constant 0 : i32
    %c0_i32_0 = arith.constant 0 : i32
    %c0_i32_1 = arith.constant 0 : i32
    return %c0_i32, %c0_i32_0 : i32, i32
  }
  func.func @transform_3(%arg0: i32) -> (i32, i32) {
    %c0_i32 = arith.constant 0 : i32
    %c0_i32_0 = arith.constant 0 : i32
    %c0_i32_1 = arith.constant 0 : i32
    return %c0_i32, %c0_i32_0 : i32, i32
  }
  func.func @transform_4(%arg0: i32) -> (i32, i32) {
    %c0_i32 = arith.constant 0 : i32
    %c0_i32_0 = arith.constant 0 : i32
    %c0_i32_1 = arith.constant 0 : i32
    return %c0_i32, %c0_i32_0 : i32, i32
  }
}

</mosaic_0001>

<llo_original>
// kernel: tpu_custom_call.1
$region0: #{tpu_custom_call.1}
  #allocation0 [shape = 'u32[]', space=smem, size = 0x4, offset = 0x4, fixed_abs, tag = 'smem constant byte address 0x4 - core index']
  #allocation1 [shape = 'u32[72,128]{1,0:T(1,128)}', space=vmem, size = 0x9000, scoped, tag = 'internal scratch']
  %s0 = inlined_call_operand.hbm [shape: f32[2,16,16], index: 0, kind: input, shape index: {}]
  %s1 = inlined_call_operand.hbm [shape: f32[2,16,16], index: 1, kind: input, shape index: {}]
  %s2 = inlined_call_operand.hbm [shape: f32[16,16], index: 2, kind: input, shape index: {}]
  %s3 = inlined_call_operand.hbm [shape: f32[16,16], index: 3, kind: input, shape index: {}]
  %s4 = inlined_call_operand.vmem [shape: f32[2,1], index: 4, kind: output, shape index: {}]
  %s5 = sld [smem:[#allocation0]]
  $region42: #{tpu_custom_call.1} parent=0
    _
  %s7 = ssub.s32 1, %s5
  %s8 = scalar_select 0, %s7, %s5
  $region1: #{tpu_custom_call.1} parent=0
    #allocation2 [shape = 'u8[16384]{0}', space=vmem, size = 0x4000, scoped, tag = 'input window, operand 0, single buffered']
    #allocation3 [shape = 's32[1]{0}', space=sflag, size = 0x4, scoped, tag = 'scoped memory for tpu_custom_call.1']
    #allocation4 [shape = 's32[1]{0}', space=sflag, size = 0x4, scoped, tag = 'scoped memory for tpu_custom_call.1']
    #allocation5 [shape = 'u8[16384]{0}', space=vmem, size = 0x4000, scoped, tag = 'input window, operand 1, single buffered']
    #allocation6 [shape = 's32[1]{0}', space=sflag, size = 0x4, scoped, tag = 'scoped memory for tpu_custom_call.1']
    #allocation7 [shape = 'u8[8192]{0}', space=vmem, size = 0x2000, scoped, tag = 'input window, operand 2, single buffered']
    #allocation8 [shape = 'u8[8192]{0}', space=vmem, size = 0x2000, scoped, tag = 'input window, operand 3, single buffered']
    #allocation9 [shape = 's32[1]{0}', space=sflag, size = 0x4, scoped, tag = 'scoped memory for tpu_custom_call.1']
    #allocation10 [shape = 'u8[1024]{0}', space=smem, size = 0x400, scoped, tag = 'output window, operand 0, single buffered']
    %9 = vsyncpa [#allocation3], 0
    %10 = vsyncpa [#allocation6], 0
    %11 = vsyncpa [#allocation9], 0
    %12 = vsyncpa [#allocation4], 0
    // Predicated region
    $region2: #{tpu_custom_call.1} parent=1 // pred_check
      _
    $region3: #{tpu_custom_call.1} parent=1 // pred_check_branch
      %14 = sbr.rel (0) target = $region5
    $region4: #{tpu_custom_call.1} parent=1 // pred_region
      %16 = vsyncadd [#allocation3], 0
      %s17 = sshll.u32 %s0, 4
      %s18 = int_to_ptr.hbm [resolvable:$true] %s17
      %s19 = sshll.u32 [#allocation2], 4
      %s20 = int_to_ptr.vmem [resolvable:$true] %s19
      %25 = dma.hbm_to_vmem [thread:$0]  %s18, 512, %s20, [#allocation3], 128, 128, 8
    $region5: #{tpu_custom_call.1} parent=1 // pred_fallthru
      _
    // Predicated region
    $region6: #{tpu_custom_call.1} parent=1 // pred_check
      _
    $region7: #{tpu_custom_call.1} parent=1 // pred_check_branch
      %27 = sbr.rel (0) target = $region9
    $region8: #{tpu_custom_call.1} parent=1 // pred_region
      %29 = vsyncadd [#allocation6], 0
      %s30 = sshll.u32 %s1, 4
      %s31 = int_to_ptr.hbm [resolvable:$true] %s30
      %s32 = sshll.u32 [#allocation5], 4
      %s33 = int_to_ptr.vmem [resolvable:$true] %s32
      %38 = dma.hbm_to_vmem [thread:$0]  %s31, 512, %s33, [#allocation6], 128, 128, 8
    $region9: #{tpu_custom_call.1} parent=1 // pred_fallthru
      _
    // Predicated region
    $region10: #{tpu_custom_call.1} parent=1 // pred_check
      _
    $region11: #{tpu_custom_call.1} parent=1 // pred_check_branch
      %40 = sbr.rel (0) target = $region13
    $region12: #{tpu_custom_call.1} parent=1 // pred_region
      %42 = vsyncadd [#allocation6], 0
      %s43 = sshll.u32 %s2, 4
      %s44 = int_to_ptr.hbm [resolvable:$true] %s43
      %s45 = sshll.u32 [#allocation7], 4
      %s46 = int_to_ptr.vmem [resolvable:$true] %s45
      %51 = dma.hbm_to_vmem [thread:$0]  %s44, 256, %s46, [#allocation6], 128, 128, 8
    $region13: #{tpu_custom_call.1} parent=1 // pred_fallthru
      _
    // Predicated region
    $region14: #{tpu_custom_call.1} parent=1 // pred_check
      _
    $region15: #{tpu_custom_call.1} parent=1 // pred_check_branch
      %53 = sbr.rel (0) target = $region17
    $region16: #{tpu_custom_call.1} parent=1 // pred_region
      %55 = vsyncadd [#allocation9], 0
      %s56 = sshll.u32 %s3, 4
      %s57 = int_to_ptr.hbm [resolvable:$true] %s56
      %s58 = sshll.u32 [#allocation8], 4
      %s59 = int_to_ptr.vmem [resolvable:$true] %s58
      %64 = dma.hbm_to_vmem [thread:$0]  %s57, 256, %s59, [#allocation9], 128, 128, 8
    $region17: #{tpu_custom_call.1} parent=1 // pred_fallthru
      _
    // Predicated region
    $region18: #{tpu_custom_call.1} parent=1 // pred_check
      _
    $region19: #{tpu_custom_call.1} parent=1 // pred_check_branch
      %66 = sbr.rel (0) target = $region21
    $region20: #{tpu_custom_call.1} parent=1 // pred_region
      %68 = dma.done [#allocation3], 512
    $region21: #{tpu_custom_call.1} parent=1 // pred_fallthru
      _
    // Predicated region
    $region22: #{tpu_custom_call.1} parent=1 // pred_check
      _
    $region23: #{tpu_custom_call.1} parent=1 // pred_check_branch
      %70 = sbr.rel (0) target = $region25
    $region24: #{tpu_custom_call.1} parent=1 // pred_region
      %72 = dma.done [#allocation6], 512
    $region25: #{tpu_custom_call.1} parent=1 // pred_fallthru
      _
    // Predicated region
    $region26: #{tpu_custom_call.1} parent=1 // pred_check
      _
    $region27: #{tpu_custom_call.1} parent=1 // pred_check_branch
      %74 = sbr.rel (0) target = $region29
    $region28: #{tpu_custom_call.1} parent=1 // pred_region
      %76 = dma.done [#allocation6], 256
    $region29: #{tpu_custom_call.1} parent=1 // pred_fallthru
      _
    // Predicated region
    $region30: #{tpu_custom_call.1} parent=1 // pred_check
      _
    $region31: #{tpu_custom_call.1} parent=1 // pred_check_branch
      %78 = sbr.rel (0) target = $region33
    $region32: #{tpu_custom_call.1} parent=1 // pred_region
      %80 = dma.done [#allocation9], 256
    $region33: #{tpu_custom_call.1} parent=1 // pred_fallthru
      _
    %v81 = vld [vmem:[#allocation2] sm:$0xff]
    %v82 = vld [vmem:[#allocation2 + $0x8] sm:$0xff]
    %v83 = vld [vmem:[#allocation2 + $0x10] sm:$0xff]
    %v84 = vld [vmem:[#allocation2 + $0x18] sm:$0xff]
    %v85 = vld [vmem:[#allocation5] sm:$0xff]
    %v86 = vld [vmem:[#allocation5 + $0x8] sm:$0xff]
    %v87 = vld [vmem:[#allocation5 + $0x10] sm:$0xff]
    %v88 = vld [vmem:[#allocation5 + $0x18] sm:$0xff]
    %v89 = vld [vmem:[#allocation7] sm:$0xff]
    %v90 = vld [vmem:[#allocation7 + $0x8] sm:$0xff]
    %v91 = vld [vmem:[#allocation8] sm:$0xff]
    %v92 = vld [vmem:[#allocation8 + $0x8] sm:$0xff]
    %v93 = vmul.f32 %v81, %v81
    %v94 = vmul.f32 %v82, %v82
    %v95 = vmul.f32 %v83, %v83
    %v96 = vmul.f32 %v84, %v84
    %v97 = vmul.f32 %v85, %v85
    %v98 = vmul.f32 %v86, %v86
    %v99 = vmul.f32 %v87, %v87
    %v100 = vmul.f32 %v88, %v88
    %v101 = vmul.f32 %v81, %v85
    %v102 = vmul.f32 %v82, %v86
    %v103 = vmul.f32 %v83, %v87
    %v104 = vmul.f32 %v84, %v88
    %vm105 = vcmask 130048
    %v107 = vsel %vm105, %v81, 0
    %v110 = vsel %vm105, %v82, 0
    %v113 = vsel %vm105, %v83, 0
    %v116 = vsel %vm105, %v84, 0
    %v119 = vsel %vm105, %v85, 0
    %v122 = vsel %vm105, %v86, 0
    %v125 = vsel %vm105, %v87, 0
    %v128 = vsel %vm105, %v88, 0
    %v131 = vsel %vm105, %v93, 0
    %v134 = vsel %vm105, %v94, 0
    %v137 = vsel %vm105, %v95, 0
    %v140 = vsel %vm105, %v96, 0
    %v143 = vsel %vm105, %v97, 0
    %v146 = vsel %vm105, %v98, 0
    %v149 = vsel %vm105, %v99, 0
    %v152 = vsel %vm105, %v100, 0
    %v155 = vsel %vm105, %v101, 0
    %v158 = vsel %vm105, %v102, 0
    %v161 = vsel %vm105, %v103, 0
    %v164 = vsel %vm105, %v104, 0
    %166 = vmatpush.msra.mxu0 0.0
    %167 = vmatpush.msra.mxu0 0.0
    %168 = vmatpush.msra.mxu0 0.0
    %169 = vmatpush.msra.mxu0 0.0
    %170 = vmatpush.msra.mxu0 0.0
    %171 = vmatpush.msra.mxu0 0.0
    %172 = vmatpush.msra.mxu0 0.0
    %173 = vmatpush.msra.mxu0 0.0
    %174 = vmatpush.msra.mxu0 0.0
    %175 = vmatpush.msra.mxu0 0.0
    %176 = vmatpush.msra.mxu0 0.0
    %177 = vmatpush.msra.mxu0 0.0
    %178 = vmatpush.msra.mxu0 0.0
    %179 = vmatpush.msra.mxu0 0.0
    %180 = vmatpush.msra.mxu0 %v92
    %181 = vmatpush.msra.mxu0 %v91
    %182 = vmatmul.f32.gmra.mxu0 %v107
    %v183 = vpop.f32.mrf.mxu0
    %v184 = vadd.f32 0.0, %v183
    %185 = vmatmul.f32.gmra.mxu0 %v110
    %v186 = vpop.f32.mrf.mxu0
    %v187 = vadd.f32 0.0, %v186
    %188 = vmatmul.f32.gmra.mxu0 %v113
    %v189 = vpop.f32.mrf.mxu0
    %v190 = vadd.f32 0.0, %v189
    %191 = vmatmul.f32.gmra.mxu0 %v116
    %v192 = vpop.f32.mrf.mxu0
    %v193 = vadd.f32 0.0, %v192
    %194 = vmatmul.f32.gmra.mxu0 %v119
    %v195 = vpop.f32.mrf.mxu0
    %v196 = vadd.f32 0.0, %v195
    %197 = vmatmul.f32.gmra.mxu0 %v122
    %v198 = vpop.f32.mrf.mxu0
    %v199 = vadd.f32 0.0, %v198
    %200 = vmatmul.f32.gmra.mxu0 %v125
    %v201 = vpop.f32.mrf.mxu0
    %v202 = vadd.f32 0.0, %v201
    %203 = vmatmul.f32.gmra.mxu0 %v128
    %v204 = vpop.f32.mrf.mxu0
    %v205 = vadd.f32 0.0, %v204
    %206 = vmatmul.f32.gmra.mxu0 %v131
    %v207 = vpop.f32.mrf.mxu0
    %v208 = vadd.f32 0.0, %v207
    %209 = vmatmul.f32.gmra.mxu0 %v134
    %v210 = vpop.f32.mrf.mxu0
    %v211 = vadd.f32 0.0, %v210
    %212 = vmatmul.f32.gmra.mxu0 %v137
    %v213 = vpop.f32.mrf.mxu0
    %v214 = vadd.f32 0.0, %v213
    %215 = vmatmul.f32.gmra.mxu0 %v140
    %v216 = vpop.f32.mrf.mxu0
    %v217 = vadd.f32 0.0, %v216
    %218 = vmatmul.f32.gmra.mxu0 %v143
    %v219 = vpop.f32.mrf.mxu0
    %v220 = vadd.f32 0.0, %v219
    %221 = vmatmul.f32.gmra.mxu0 %v146
    %v222 = vpop.f32.mrf.mxu0
    %v223 = vadd.f32 0.0, %v222
    %224 = vmatmul.f32.gmra.mxu0 %v149
    %v225 = vpop.f32.mrf.mxu0
    %v226 = vadd.f32 0.0, %v225
    %227 = vmatmul.f32.gmra.mxu0 %v152
    %v228 = vpop.f32.mrf.mxu0
    %v229 = vadd.f32 0.0, %v228
    %230 = vmatmul.f32.gmra.mxu0 %v155
    %v231 = vpop.f32.mrf.mxu0
    %v232 = vadd.f32 0.0, %v231
    %233 = vmatmul.f32.gmra.mxu0 %v158
    %v234 = vpop.f32.mrf.mxu0
    %v235 = vadd.f32 0.0, %v234
    %236 = vmatmul.f32.gmra.mxu0 %v161
    %v237 = vpop.f32.mrf.mxu0
    %v238 = vadd.f32 0.0, %v237
    %239 = vmatmul.f32.gmra.mxu0 %v164
    %v240 = vpop.f32.mrf.mxu0
    %v241 = vadd.f32 0.0, %v240
    %242 = vdwg.mxu0
    %v244 = vsel %vm105, %v89, 0
    %v247 = vsel %vm105, %v90, 0
    %249 = vmatpush.msra.mxu0 0.0
    %250 = vmatpush.msra.mxu0 0.0
    %251 = vmatpush.msra.mxu0 0.0
    %252 = vmatpush.msra.mxu0 0.0
    %253 = vmatpush.msra.mxu0 0.0
    %254 = vmatpush.msra.mxu0 0.0
    %255 = vmatpush.msra.mxu0 0.0
    %256 = vmatpush.msra.mxu0 0.0
    %257 = vmatpush.msra.mxu0 0.0
    %258 = vmatpush.msra.mxu0 0.0
    %259 = vmatpush.msra.mxu0 0.0
    %260 = vmatpush.msra.mxu0 0.0
    %261 = vmatpush.msra.mxu0 0.0
    %262 = vmatpush.msra.mxu0 0.0
    %263 = vmatpush.msra.mxu0 %v187
    %264 = vmatpush.msra.mxu0 %v184
    %265 = vmatmul.f32.gmra.mxu0 %v244
    %v266 = vpop.f32.mrf.mxu0
    %v267 = vadd.f32 0.0, %v266
    %268 = vmatmul.f32.gmra.mxu0 %v247
    %v269 = vpop.f32.mrf.mxu0
    %v270 = vadd.f32 0.0, %v269
    %271 = vdwg.mxu0
    %272 = vmatpush.msra.mxu0 0.0
    %273 = vmatpush.msra.mxu0 0.0
    %274 = vmatpush.msra.mxu0 0.0
    %275 = vmatpush.msra.mxu0 0.0
    %276 = vmatpush.msra.mxu0 0.0
    %277 = vmatpush.msra.mxu0 0.0
    %278 = vmatpush.msra.mxu0 0.0
    %279 = vmatpush.msra.mxu0 0.0
    %280 = vmatpush.msra.mxu0 0.0
    %281 = vmatpush.msra.mxu0 0.0
    %282 = vmatpush.msra.mxu0 0.0
    %283 = vmatpush.msra.mxu0 0.0
    %284 = vmatpush.msra.mxu0 0.0
    %285 = vmatpush.msra.mxu0 0.0
    %286 = vmatpush.msra.mxu0 %v193
    %287 = vmatpush.msra.mxu0 %v190
    %288 = vmatmul.f32.gmra.mxu0 %v244
    %v289 = vpop.f32.mrf.mxu0
    %v290 = vadd.f32 0.0, %v289
    %291 = vmatmul.f32.gmra.mxu0 %v247
    %v292 = vpop.f32.mrf.mxu0
    %v293 = vadd.f32 0.0, %v292
    %294 = vdwg.mxu0
    %295 = vmatpush.msra.mxu0 0.0
    %296 = vmatpush.msra.mxu0 0.0
    %297 = vmatpush.msra.mxu0 0.0
    %298 = vmatpush.msra.mxu0 0.0
    %299 = vmatpush.msra.mxu0 0.0
    %300 = vmatpush.msra.mxu0 0.0
    %301 = vmatpush.msra.mxu0 0.0
    %302 = vmatpush.msra.mxu0 0.0
    %303 = vmatpush.msra.mxu0 0.0
    %304 = vmatpush.msra.mxu0 0.0
    %305 = vmatpush.msra.mxu0 0.0
    %306 = vmatpush.msra.mxu0 0.0
    %307 = vmatpush.msra.mxu0 0.0
    %308 = vmatpush.msra.mxu0 0.0
    %309 = vmatpush.msra.mxu0 %v199
    %310 = vmatpush.msra.mxu0 %v196
    %311 = vmatmul.f32.gmra.mxu0 %v244
    %v312 = vpop.f32.mrf.mxu0
    %v313 = vadd.f32 0.0, %v312
    %314 = vmatmul.f32.gmra.mxu0 %v247
    %v315 = vpop.f32.mrf.mxu0
    %v316 = vadd.f32 0.0, %v315
    %317 = vdwg.mxu0
    %318 = vmatpush.msra.mxu0 0.0
    %319 = vmatpush.msra.mxu0 0.0
    %320 = vmatpush.msra.mxu0 0.0
    %321 = vmatpush.msra.mxu0 0.0
    %322 = vmatpush.msra.mxu0 0.0
    %323 = vmatpush.msra.mxu0 0.0
    %324 = vmatpush.msra.mxu0 0.0
    %325 = vmatpush.msra.mxu0 0.0
    %326 = vmatpush.msra.mxu0 0.0
    %327 = vmatpush.msra.mxu0 0.0
    %328 = vmatpush.msra.mxu0 0.0
    %329 = vmatpush.msra.mxu0 0.0
    %330 = vmatpush.msra.mxu0 0.0
    %331 = vmatpush.msra.mxu0 0.0
    %332 = vmatpush.msra.mxu0 %v205
    %333 = vmatpush.msra.mxu0 %v202
    %334 = vmatmul.f32.gmra.mxu0 %v244
    %v335 = vpop.f32.mrf.mxu0
    %v336 = vadd.f32 0.0, %v335
    %337 = vmatmul.f32.gmra.mxu0 %v247
    %v338 = vpop.f32.mrf.mxu0
    %v339 = vadd.f32 0.0, %v338
    %340 = vdwg.mxu0
    %341 = vmatpush.msra.mxu0 0.0
    %342 = vmatpush.msra.mxu0 0.0
    %343 = vmatpush.msra.mxu0 0.0
    %344 = vmatpush.msra.mxu0 0.0
    %345 = vmatpush.msra.mxu0 0.0
    %346 = vmatpush.msra.mxu0 0.0
    %347 = vmatpush.msra.mxu0 0.0
    %348 = vmatpush.msra.mxu0 0.0
    %349 = vmatpush.msra.mxu0 0.0
    %350 = vmatpush.msra.mxu0 0.0
    %351 = vmatpush.msra.mxu0 0.0
    %352 = vmatpush.msra.mxu0 0.0
    %353 = vmatpush.msra.mxu0 0.0
    %354 = vmatpush.msra.mxu0 0.0
    %355 = vmatpush.msra.mxu0 %v211
    %356 = vmatpush.msra.mxu0 %v208
    %357 = vmatmul.f32.gmra.mxu0 %v244
    %v358 = vpop.f32.mrf.mxu0
    %v359 = vadd.f32 0.0, %v358
    %360 = vmatmul.f32.gmra.mxu0 %v247
    %v361 = vpop.f32.mrf.mxu0
    %v362 = vadd.f32 0.0, %v361
    %363 = vdwg.mxu0
    %364 = vmatpush.msra.mxu0 0.0
    %365 = vmatpush.msra.mxu0 0.0
    %366 = vmatpush.msra.mxu0 0.0
    %367 = vmatpush.msra.mxu0 0.0
    %368 = vmatpush.msra.mxu0 0.0
    %369 = vmatpush.msra.mxu0 0.0
    %370 = vmatpush.msra.mxu0 0.0
    %371 = vmatpush.msra.mxu0 0.0
    %372 = vmatpush.msra.mxu0 0.0
    %373 = vmatpush.msra.mxu0 0.0
    %374 = vmatpush.msra.mxu0 0.0
    %375 = vmatpush.msra.mxu0 0.0
    %376 = vmatpush.msra.mxu0 0.0
    %377 = vmatpush.msra.mxu0 0.0
    %378 = vmatpush.msra.mxu0 %v217
    %379 = vmatpush.msra.mxu0 %v214
    %380 = vmatmul.f32.gmra.mxu0 %v244
    %v381 = vpop.f32.mrf.mxu0
    %v382 = vadd.f32 0.0, %v381
    %383 = vmatmul.f32.gmra.mxu0 %v247
    %v384 = vpop.f32.mrf.mxu0
    %v385 = vadd.f32 0.0, %v384
    %386 = vdwg.mxu0
    %387 = vmatpush.msra.mxu0 0.0
    %388 = vmatpush.msra.mxu0 0.0
    %389 = vmatpush.msra.mxu0 0.0
    %390 = vmatpush.msra.mxu0 0.0
    %391 = vmatpush.msra.mxu0 0.0
    %392 = vmatpush.msra.mxu0 0.0
    %393 = vmatpush.msra.mxu0 0.0
    %394 = vmatpush.msra.mxu0 0.0
    %395 = vmatpush.msra.mxu0 0.0
    %396 = vmatpush.msra.mxu0 0.0
    %397 = vmatpush.msra.mxu0 0.0
    %398 = vmatpush.msra.mxu0 0.0
    %399 = vmatpush.msra.mxu0 0.0
    %400 = vmatpush.msra.mxu0 0.0
    %401 = vmatpush.msra.mxu0 %v223
    %402 = vmatpush.msra.mxu0 %v220
    %403 = vmatmul.f32.gmra.mxu0 %v244
    %v404 = vpop.f32.mrf.mxu0
    %v405 = vadd.f32 0.0, %v404
    %406 = vmatmul.f32.gmra.mxu0 %v247
    %v407 = vpop.f32.mrf.mxu0
    %v408 = vadd.f32 0.0, %v407
    %409 = vdwg.mxu0
    %410 = vmatpush.msra.mxu0 0.0
    %411 = vmatpush.msra.mxu0 0.0
    %412 = vmatpush.msra.mxu0 0.0
    %413 = vmatpush.msra.mxu0 0.0
    %414 = vmatpush.msra.mxu0 0.0
    %415 = vmatpush.msra.mxu0 0.0
    %416 = vmatpush.msra.mxu0 0.0
    %417 = vmatpush.msra.mxu0 0.0
    %418 = vmatpush.msra.mxu0 0.0
    %419 = vmatpush.msra.mxu0 0.0
    %420 = vmatpush.msra.mxu0 0.0
    %421 = vmatpush.msra.mxu0 0.0
    %422 = vmatpush.msra.mxu0 0.0
    %423 = vmatpush.msra.mxu0 0.0
    %424 = vmatpush.msra.mxu0 %v229
    %425 = vmatpush.msra.mxu0 %v226
    %426 = vmatmul.f32.gmra.mxu0 %v244
    %v427 = vpop.f32.mrf.mxu0
    %v428 = vadd.f32 0.0, %v427
    %429 = vmatmul.f32.gmra.mxu0 %v247
    %v430 = vpop.f32.mrf.mxu0
    %v431 = vadd.f32 0.0, %v430
    %432 = vdwg.mxu0
    %433 = vmatpush.msra.mxu0 0.0
    %434 = vmatpush.msra.mxu0 0.0
    %435 = vmatpush.msra.mxu0 0.0
    %436 = vmatpush.msra.mxu0 0.0
    %437 = vmatpush.msra.mxu0 0.0
    %438 = vmatpush.msra.mxu0 0.0
    %439 = vmatpush.msra.mxu0 0.0
    %440 = vmatpush.msra.mxu0 0.0
    %441 = vmatpush.msra.mxu0 0.0
    %442 = vmatpush.msra.mxu0 0.0
    %443 = vmatpush.msra.mxu0 0.0
    %444 = vmatpush.msra.mxu0 0.0
    %445 = vmatpush.msra.mxu0 0.0
    %446 = vmatpush.msra.mxu0 0.0
    %447 = vmatpush.msra.mxu0 %v235
    %448 = vmatpush.msra.mxu0 %v232
    %449 = vmatmul.f32.gmra.mxu0 %v244
    %v450 = vpop.f32.mrf.mxu0
    %v451 = vadd.f32 0.0, %v450
    %452 = vmatmul.f32.gmra.mxu0 %v247
    %v453 = vpop.f32.mrf.mxu0
    %v454 = vadd.f32 0.0, %v453
    %455 = vdwg.mxu0
    %456 = vmatpush.msra.mxu0 0.0
    %457 = vmatpush.msra.mxu0 0.0
    %458 = vmatpush.msra.mxu0 0.0
    %459 = vmatpush.msra.mxu0 0.0
    %460 = vmatpush.msra.mxu0 0.0
    %461 = vmatpush.msra.mxu0 0.0
    %462 = vmatpush.msra.mxu0 0.0
    %463 = vmatpush.msra.mxu0 0.0
    %464 = vmatpush.msra.mxu0 0.0
    %465 = vmatpush.msra.mxu0 0.0
    %466 = vmatpush.msra.mxu0 0.0
    %467 = vmatpush.msra.mxu0 0.0
    %468 = vmatpush.msra.mxu0 0.0
    %469 = vmatpush.msra.mxu0 0.0
    %470 = vmatpush.msra.mxu0 %v241
    %471 = vmatpush.msra.mxu0 %v238
    %472 = vmatmul.f32.gmra.mxu0 %v244
    %v473 = vpop.f32.mrf.mxu0
    %v474 = vadd.f32 0.0, %v473
    %475 = vmatmul.f32.gmra.mxu0 %v247
    %v476 = vpop.f32.mrf.mxu0
    %v477 = vadd.f32 0.0, %v476
    %478 = vdwg.mxu0
    %v479 = vmul.f32 %v267, %v267
    %v480 = vmul.f32 %v270, %v270
    %v481 = vmul.f32 %v290, %v290
    %v482 = vmul.f32 %v293, %v293
    %v483 = vmul.f32 %v313, %v313
    %v484 = vmul.f32 %v316, %v316
    %v485 = vmul.f32 %v336, %v336
    %v486 = vmul.f32 %v339, %v339
    %v487 = vmul.f32 %v267, %v313
    %v488 = vmul.f32 %v270, %v316
    %v489 = vmul.f32 %v290, %v336
    %v490 = vmul.f32 %v293, %v339
    %v491 = vsub.f32 %v359, %v479
    %v492 = vsub.f32 %v362, %v480
    %v493 = vsub.f32 %v382, %v481
    %v494 = vsub.f32 %v385, %v482
    %v495 = vsub.f32 %v405, %v483
    %v496 = vsub.f32 %v408, %v484
    %v497 = vsub.f32 %v428, %v485
    %v498 = vsub.f32 %v431, %v486
    %v499 = vsub.f32 %v451, %v487
    %v500 = vsub.f32 %v454, %v488
    %v501 = vsub.f32 %v474, %v489
    %v502 = vsub.f32 %v477, %v490
    %v503 = vmul.f32 %v487, 2.0
    %v504 = vmul.f32 %v488, 2.0
    %v505 = vmul.f32 %v489, 2.0
    %v506 = vmul.f32 %v490, 2.0
    %v507 = vadd.f32 %v503, 0.0001
    %v508 = vadd.f32 %v504, 0.0001
    %v509 = vadd.f32 %v505, 0.0001
    %v510 = vadd.f32 %v506, 0.0001
    %v511 = vmul.f32 %v499, 2.0
    %v512 = vmul.f32 %v500, 2.0
    %v513 = vmul.f32 %v501, 2.0
    %v514 = vmul.f32 %v502, 2.0
    %v515 = vadd.f32 %v511, 0.0009
    %v516 = vadd.f32 %v512, 0.0009
    %v517 = vadd.f32 %v513, 0.0009
    %v518 = vadd.f32 %v514, 0.0009
    %v519 = vmul.f32 %v507, %v515
    %v520 = vmul.f32 %v508, %v516
    %v521 = vmul.f32 %v509, %v517
    %v522 = vmul.f32 %v510, %v518
    %v523 = vadd.f32 %v479, %v483
    %v524 = vadd.f32 %v480, %v484
    %v525 = vadd.f32 %v481, %v485
    %v526 = vadd.f32 %v482, %v486
    %v527 = vadd.f32 %v523, 0.0001
    %v528 = vadd.f32 %v524, 0.0001
    %v529 = vadd.f32 %v525, 0.0001
    %v530 = vadd.f32 %v526, 0.0001
    %v531 = vadd.f32 %v491, %v495
    %v532 = vadd.f32 %v492, %v496
    %v533 = vadd.f32 %v493, %v497
    %v534 = vadd.f32 %v494, %v498
    %v535 = vadd.f32 %v531, 0.0009
    %v536 = vadd.f32 %v532, 0.0009
    %v537 = vadd.f32 %v533, 0.0009
    %v538 = vadd.f32 %v534, 0.0009
    %v539 = vmul.f32 %v527, %v535
    %v540 = vmul.f32 %v528, %v536
    %v541 = vmul.f32 %v529, %v537
    %v542 = vmul.f32 %v530, %v538
    %v543 = vrcp.pop %v539
    %v544 = vmul.f32 %v539, %v543
    %v545 = vsub.f32 1.0, %v544
    %v546 = vmul.f32 %v543, %v545
    %v547 = vadd.f32 %v543, %v546
    %vm548 = vweird.f32 %v539
    %vm549 = vweird.f32 %v543
    %vm550 = vmor %vm548, %vm549
    %v551 = vsel %vm550, %v543, %v547
    %v552 = vand.u32 2147483647, %v539
    %vm553 = vcmp.eq.f32.partialorder %v552, 8.507059e+37
    %v554 = vand.u32 %v539, 2147483648
    %v555 = vor.u32 1.1754944e-38, %v554
    %v556 = vsel %vm553, %v555, %v551
    %v557 = vmul.f32 %v519, %v556
    %v558 = vrcp.pop %v540
    %v559 = vmul.f32 %v540, %v558
    %v560 = vsub.f32 1.0, %v559
    %v561 = vmul.f32 %v558, %v560
    %v562 = vadd.f32 %v558, %v561
    %vm563 = vweird.f32 %v540
    %vm564 = vweird.f32 %v558
    %vm565 = vmor %vm563, %vm564
    %v566 = vsel %vm565, %v558, %v562
    %v567 = vand.u32 2147483647, %v540
    %vm568 = vcmp.eq.f32.partialorder %v567, 8.507059e+37
    %v569 = vand.u32 %v540, 2147483648
    %v570 = vor.u32 1.1754944e-38, %v569
    %v571 = vsel %vm568, %v570, %v566
    %v572 = vmul.f32 %v520, %v571
    %v573 = vrcp.pop %v541
    %v574 = vmul.f32 %v541, %v573
    %v575 = vsub.f32 1.0, %v574
    %v576 = vmul.f32 %v573, %v575
    %v577 = vadd.f32 %v573, %v576
    %vm578 = vweird.f32 %v541
    %vm579 = vweird.f32 %v573
    %vm580 = vmor %vm578, %vm579
    %v581 = vsel %vm580, %v573, %v577
    %v582 = vand.u32 2147483647, %v541
    %vm583 = vcmp.eq.f32.partialorder %v582, 8.507059e+37
    %v584 = vand.u32 %v541, 2147483648
    %v585 = vor.u32 1.1754944e-38, %v584
    %v586 = vsel %vm583, %v585, %v581
    %v587 = vmul.f32 %v521, %v586
    %v588 = vrcp.pop %v542
    %v589 = vmul.f32 %v542, %v588
    %v590 = vsub.f32 1.0, %v589
    %v591 = vmul.f32 %v588, %v590
    %v592 = vadd.f32 %v588, %v591
    %vm593 = vweird.f32 %v542
    %vm594 = vweird.f32 %v588
    %vm595 = vmor %vm593, %vm594
    %v596 = vsel %vm595, %v588, %v592
    %v597 = vand.u32 2147483647, %v542
    %vm598 = vcmp.eq.f32.partialorder %v597, 8.507059e+37
    %v599 = vand.u32 %v542, 2147483648
    %v600 = vor.u32 1.1754944e-38, %v599
    %v601 = vsel %vm598, %v600, %v596
    %v602 = vmul.f32 %v522, %v601
    %s603 = smul.u32 0, 2
    %v604 = vsel %vm105, %v557, 0.0
    %v605 = vsel %vm105, %v572, 0.0
    %v606 = vadd.f32 %v604, %v605
    %607 = vadd.xlane.f32.xlu0 %v606
    %v608 = vpop.xlane.xlu0 %607
    %v609 = vrot.slane %v608, 4
    %v610 = vadd.f32 %v608, %v609
    %v611 = vrot.slane %v610, 2
    %v612 = vadd.f32 %v610, %v611
    %v613 = vrot.slane %v612, 1
    %v614 = vadd.f32 %v612, %v613
    %s615 = vtos %v614
    %s616 = smul.u32 %s603, 128
    %s617 = scalar_lea.smem [#allocation10], %s616
    %618 = sst [smem:[%s617]] %s615
    %v619 = vsel %vm105, %v587, 0.0
    %v620 = vsel %vm105, %v602, 0.0
    %v621 = vadd.f32 %v619, %v620
    %622 = vadd.xlane.f32.xlu0 %v621
    %v623 = vpop.xlane.xlu0 %622
    %v624 = vrot.slane %v623, 4
    %v625 = vadd.f32 %v623, %v624
    %v626 = vrot.slane %v625, 2
    %v627 = vadd.f32 %v625, %v626
    %v628 = vrot.slane %v627, 1
    %v629 = vadd.f32 %v627, %v628
    %s630 = vtos %v629
    %s631 = sadd.s32 %s603, 1
    %s632 = smul.u32 %s631, 128
    %s633 = scalar_lea.smem [#allocation10], %s632
    %634 = sst [smem:[%s633]] %s630
    // Predicated region
    $region34: #{tpu_custom_call.1} parent=1 // pred_check
      _
    $region35: #{tpu_custom_call.1} parent=1 // pred_check_branch
      %636 = sbr.rel (0) target = $region37
    $region36: #{tpu_custom_call.1} parent=1 // pred_region
      %638 = vsyncadd [#allocation4], 0
      %s640 = sshll.u32 %s4, 4
      %s641 = int_to_ptr.vmem [resolvable:$true] %s640
      %643 = dma.smem_to_vmem [#allocation10], 32, %s641, [#allocation4]
    $region37: #{tpu_custom_call.1} parent=1 // pred_fallthru
      _
    // Predicated region
    $region38: #{tpu_custom_call.1} parent=1 // pred_check
      _
    $region39: #{tpu_custom_call.1} parent=1 // pred_check_branch
      %645 = sbr.rel (0) target = $region41
    $region40: #{tpu_custom_call.1} parent=1 // pred_region
      %647 = dma.done [#allocation4], 32
    $region41: #{tpu_custom_call.1} parent=1 // pred_fallthru
      _
    %648 = sfence
    %649 = vsyncpa [#allocation3], 1
    %650 = vsyncpa [#allocation6], 1
    %651 = vsyncpa [#allocation9], 1
    %652 = vsyncpa [#allocation4], 1

</llo_original>
